<compile_context>
chip_gen: v6e
topology: v6e:2x2x1
jax: 0.10.0
libtpu: 0.0.40
codegen_flags: <defaults>
</compile_context>

<pallas_src>
import functools

import jax
import jax.numpy as jnp
from jax import lax
from jax.experimental import pallas as pl
from jax.experimental.pallas import tpu as pltpu

BN_EPS = 1e-5


# --------------------------------------------------------------------------- #
# helpers
# --------------------------------------------------------------------------- #
def _vmem_limit_bytes():
    """Raise the scoped-VMEM ceiling above the 16/32 MiB defaults, with
    generation-aware headroom (v7x has only 64 MiB per TensorCore)."""
    try:
        cap = int(pltpu.get_tpu_info().vmem_capacity_bytes)
    except Exception:
        cap = 64 * 1024 * 1024
    return max(32 * 1024 * 1024, (cap * 3) // 4)


def _pick_row_tile(n, target):
    """Largest tile <= target that is a multiple of 8 and divides n (else n)."""
    if n % 8 != 0:
        return n
    t = min(target, n)
    t -= t % 8
    while t >= 8:
        if n % t == 0:
            return t
        t -= 8
    return n


def _pick_col_tile(n, target):
    """Lane-axis tile: multiple of 128 that divides n, else the full dim."""
    if n <= 128 or n % 128 != 0:
        return n
    t = min(target, n)
    t -= t % 128
    while t >= 128:
        if n % t == 0:
            return t
        t -= 128
    return n


def build_norm_adj(edge_index, num_nodes):
    """Dense  A_hat = D^-1/2 (A + I) D^-1/2  (PyG gcn_norm semantics). JAX glue."""
    src = edge_index[0]
    dst = edge_index[1]
    loop = jnp.arange(num_nodes, dtype=src.dtype)
    src = jnp.concatenate([src, loop])
    dst = jnp.concatenate([dst, loop])
    A = jnp.zeros((num_nodes, num_nodes), jnp.float32).at[dst, src].add(1.0)
    deg = A.sum(axis=1)
    dinv = jnp.where(deg > 0, 1.0 / jnp.sqrt(deg), 0.0)
    return dinv[:, None] * A * dinv[None, :]


# --------------------------------------------------------------------------- #
# pass A: h1 = X0 @ W1   (row tiled, bf16 operands, f32 accumulation)
# --------------------------------------------------------------------------- #
def _feat_kernel(x0_ref, w1_ref, h1_ref):
    h = jnp.dot(x0_ref[...], w1_ref[...], preferred_element_type=jnp.float32)
    h1_ref[...] = h.astype(h1_ref.dtype)


# --------------------------------------------------------------------------- #
# pass B: x1pre = A_hat @ h1 + b1  +  per-row-tile BN partial sums
# grid = (row_tiles, col_tiles); output rows accumulated across the k axis.
# --------------------------------------------------------------------------- #
def _conv1_kernel(adj_ref, h1_ref, b1_ref, x1pre_ref, stats_ref):
    k = pl.program_id(1)
    nk = pl.num_programs(1)

    @pl.when(k == 0)
    def _():
        x1pre_ref[...] = jnp.zeros_like(x1pre_ref)

    x1pre_ref[...] += jnp.dot(adj_ref[...], h1_ref[...],
                              preferred_element_type=jnp.float32)

    @pl.when(k == nk - 1)
    def _():
        x1p = x1pre_ref[...] + b1_ref[...]            # (tm, H) f32
        x1pre_ref[...] = x1p
        # per-row-tile sum / sum-of-squares, packed into an (8, H) slab:
        #   sublane 0 = sum, sublane 1 = sum of squares, rest zero.
        s = jnp.sum(x1p, axis=0, keepdims=True)
        ss = jnp.sum(x1p * x1p, axis=0, keepdims=True)
        row = lax.broadcasted_iota(jnp.int32, stats_ref.shape, 0)
        stats_ref[...] = (jnp.where(row == 0, s, 0.0)
                          + jnp.where(row == 1, ss, 0.0))


# --------------------------------------------------------------------------- #
# pass C: BN(global stats) + ReLU + conv2 + Linear(concat) + log_softmax
# conv2 is computed as (A_hat @ relu(bn(x1pre))) @ W2 + b2  (associativity),
# so the per-step MXU work is the A_hat tile matmul; W2 applies once per row tile.
# --------------------------------------------------------------------------- #
def _conv2_head_kernel(n_nodes,
                       adj_ref, x1k_ref, x1i_ref, stats_ref,
                       gamma_ref, beta_ref, w2_ref, b2_ref,
                       wl1_ref, wl2_ref, bl_ref,
                       out_ref, acc_ref):
    k = pl.program_id(1)
    nk = pl.num_programs(1)

    # Global BatchNorm statistics (training-mode semantics) from pass-B partials.
    st = stats_ref[...]                                       # (G*8, H) f32
    rid = lax.broadcasted_iota(jnp.int32, st.shape, 0) % 8
    s = jnp.sum(jnp.where(rid == 0, st, 0.0), axis=0, keepdims=True)
    ss = jnp.sum(jnp.where(rid == 1, st, 0.0), axis=0, keepdims=True)
    mean = s * (1.0 / n_nodes)
    var = jnp.maximum(ss * (1.0 / n_nodes) - mean * mean, 0.0)
    scale = gamma_ref[...] * lax.rsqrt(var + BN_EPS)
    shift = beta_ref[...] - mean * scale

    def bn_relu(x):
        return jnp.maximum(x * scale + shift, 0.0)

    @pl.when(k == 0)
    def _():
        acc_ref[...] = jnp.zeros_like(acc_ref)

    # conv2 aggregation:  acc += A_hat[i, k] @ relu(bn(x1pre[k]))
    x1_k = bn_relu(x1k_ref[...]).astype(jnp.bfloat16)          # (tk, H)
    acc_ref[...] += jnp.dot(adj_ref[...], x1_k,
                            preferred_element_type=jnp.float32)

    @pl.when(k == nk - 1)
    def _():
        x1_i = bn_relu(x1i_ref[...])                           # (tm, H) f32
        x2_i = jnp.dot(acc_ref[...].astype(jnp.bfloat16), w2_ref[...],
                       preferred_element_type=jnp.float32) + b2_ref[...]
        # Linear over concat([x1, x2], -1) in split-weight form
        # (mathematically identical to cat([x1, x2]) @ [[Wl1], [Wl2]]).
        x4 = (jnp.dot(x1_i, wl1_ref[...], preferred_element_type=jnp.float32)
              + jnp.dot(x2_i, wl2_ref[...], preferred_element_type=jnp.float32)
              + bl_ref[...])
        # log_softmax(dim=-1), f32
        m = jnp.max(x4, axis=-1, keepdims=True)
        z = x4 - m
        out_ref[...] = z - jnp.log(jnp.sum(jnp.exp(z), axis=-1, keepdims=True))


# --------------------------------------------------------------------------- #
# wrapper
# --------------------------------------------------------------------------- #
def gnn_forward(x0, edge_index, params, *, row_tile=256, col_tile=512):
    N, Cin = x0.shape
    H = params["w1"].shape[1]
    O = params["bl"].shape[1]

    adj = build_norm_adj(edge_index, N).astype(jnp.bfloat16)   # bf16 MXU operand
    x0b = x0.astype(jnp.bfloat16)
    w1b = params["w1"].astype(jnp.bfloat16)
    w2b = params["w2"].astype(jnp.bfloat16)

    tm = _pick_row_tile(N, row_tile)
    tk = _pick_col_tile(N, col_tile)
    gi = N // tm
    gk = N // tk
    vmem = _vmem_limit_bytes()

    # ---- pass A: h1 = X0 @ W1 -------------------------------------------- #
    h1 = pl.pallas_call(
        _feat_kernel,
        out_shape=jax.ShapeDtypeStruct((N, H), jnp.bfloat16),
        grid=(gi,),
        in_specs=[pl.BlockSpec((tm, Cin), lambda i: (i, 0)),
                  pl.BlockSpec((Cin, H), lambda i: (0, 0))],
        out_specs=pl.BlockSpec((tm, H), lambda i: (i, 0)),
        compiler_params=pltpu.CompilerParams(
            dimension_semantics=("parallel",),
            vmem_limit_bytes=vmem),
        cost_estimate=pl.CostEstimate(
            flops=2 * N * Cin * H,
            transcendentals=0,
            bytes_accessed=2 * N * Cin + 2 * Cin * H + 2 * N * H),
    )(x0b, w1b)

    # ---- pass B: x1pre = A_hat @ h1 + b1 ; BN partial sums ---------------- #
    x1pre, stats = pl.pallas_call(
        _conv1_kernel,
        out_shape=(jax.ShapeDtypeStruct((N, H), jnp.float32),
                   jax.ShapeDtypeStruct((gi * 8, H), jnp.float32)),
        grid=(gi, gk),
        in_specs=[pl.BlockSpec((tm, tk), lambda i, k: (i, k)),   # A_hat tile
                  pl.BlockSpec((tk, H), lambda i, k: (k, 0)),    # h1 (k rows)
                  pl.BlockSpec((1, H), lambda i, k: (0, 0))],    # b1 (resident)
        out_specs=(pl.BlockSpec((tm, H), lambda i, k: (i, 0)),   # x1pre (acc over k)
                   pl.BlockSpec((8, H), lambda i, k: (i, 0))),   # per-tile stats
        compiler_params=pltpu.CompilerParams(
            dimension_semantics=("parallel", "arbitrary"),
            vmem_limit_bytes=vmem),
        cost_estimate=pl.CostEstimate(
            flops=2 * N * N * H,
            transcendentals=0,
            bytes_accessed=2 * N * N + 2 * N * H + 4 * N * H + 4 * gi * 8 * H),
    )(adj, h1, params["b1"])

    # ---- pass C: BN + ReLU + conv2 + linear + log_softmax ----------------- #
    out = pl.pallas_call(
        functools.partial(_conv2_head_kernel, float(N)),
        out_shape=jax.ShapeDtypeStruct((N, O), jnp.float32),
        grid=(gi, gk),
        in_specs=[pl.BlockSpec((tm, tk), lambda i, k: (i, k)),       # A_hat tile
                  pl.BlockSpec((tk, H), lambda i, k: (k, 0)),        # x1pre (k rows)
                  pl.BlockSpec((tm, H), lambda i, k: (i, 0)),        # x1pre (i rows)
                  pl.BlockSpec((gi * 8, H), lambda i, k: (0, 0)),    # BN partials
                  pl.BlockSpec((1, H), lambda i, k: (0, 0)),         # gamma
                  pl.BlockSpec((1, H), lambda i, k: (0, 0)),         # beta
                  pl.BlockSpec((H, H), lambda i, k: (0, 0)),         # w2 (bf16)
                  pl.BlockSpec((1, H), lambda i, k: (0, 0)),         # b2
                  pl.BlockSpec((H, O), lambda i, k: (0, 0)),         # wl1
                  pl.BlockSpec((H, O), lambda i, k: (0, 0)),         # wl2
                  pl.BlockSpec((1, O), lambda i, k: (0, 0))],        # bl
        out_specs=pl.BlockSpec((tm, O), lambda i, k: (i, 0)),
        scratch_shapes=[pltpu.VMEM((tm, H), jnp.float32)],           # conv2 acc
        compiler_params=pltpu.CompilerParams(
            dimension_semantics=("parallel", "arbitrary"),
            vmem_limit_bytes=vmem),
        cost_estimate=pl.CostEstimate(
            flops=2 * N * N * H + 2 * N * H * H + 4 * N * H * O,
            transcendentals=N * (O + 1),
            bytes_accessed=2 * N * N + 4 * N * H * (gk + 1) + 4 * N * O),
    )(adj, x1pre, x1pre, stats,
      params["gamma"], params["beta"], w2b, params["b2"],
      params["wl1"], params["wl2"], params["bl"])

    return out


# --------------------------------------------------------------------------- #
# params / reference / demo
# --------------------------------------------------------------------------- #
def init_params(key, in_channels, hidden_channels, out_channels):
    ks = jax.random.split(key, 6)

    def lin(k, fan_in, fan_out):
        bound = 1.0 / jnp.sqrt(float(fan_in))
        return jax.random.uniform(k, (fan_in, fan_out), jnp.float32, -bound, bound)

    return {
        "w1": lin(ks[0], in_channels, hidden_channels),
        "b1": jnp.zeros((1, hidden_channels), jnp.float32),
        "gamma": jnp.ones((1, hidden_channels), jnp.float32),
        "beta": jnp.zeros((1, hidden_channels), jnp.float32),
        "w2": lin(ks[1], hidden_channels, hidden_channels),
        "b2": jnp.zeros((1, hidden_channels), jnp.float32),
        "wl1": lin(ks[2], hidden_channels, out_channels),
        "wl2": lin(ks[3], hidden_channels, out_channels),
        "bl": jax.random.uniform(ks[4], (1, out_channels), jnp.float32,
                                 -1.0 / jnp.sqrt(2.0 * hidden_channels),
                                 1.0 / jnp.sqrt(2.0 * hidden_channels)),
    }


def gnn_reference(x0, edge_index, params):
    """Pure-JAX f32 reference of the same forward (for validation)."""
    adj = build_norm_adj(edge_index, x0.shape[0])
    x1 = adj @ (x0 @ params["w1"]) + params["b1"]
    mean = x1.mean(0, keepdims=True)
    var = ((x1 - mean) ** 2).mean(0, keepdims=True)
    x1 = (x1 - mean) * lax.rsqrt(var + BN_EPS) * params["gamma"] + params["beta"]
    x1 = jnp.maximum(x1, 0.0)
    x2 = adj @ (x1 @ params["w2"]) + params["b2"]
    x4 = x1 @ params["wl1"] + x2 @ params["wl2"] + params["bl"]
    return jax.nn.log_softmax(x4, axis=-1)


if __name__ == "__main__":
    key = jax.random.PRNGKey(0)
    k_x, k_e, k_p = jax.random.split(key, 3)

    N = 256           # nodes (exercises a (2, 2) tile grid with 128x128 tiles)
    IN_C = 16         # in_channels
    HID = 32          # hidden_channels
    OUT_C = 8         # out_channels
    E = 1024          # edges

    x0 = jax.random.normal(k_x, (N, IN_C), jnp.float32)
    edge_index = jax.random.randint(k_e, (2, E), 0, N, jnp.int32)
    params = init_params(k_p, IN_C, HID, OUT_C)

    out = gnn_forward(x0, edge_index, params, row_tile=128, col_tile=128)
    out = jax.block_until_ready(out)

    assert out.shape == (N, OUT_C)
    assert bool(jnp.all(jnp.isfinite(out)))
    # log_softmax rows must sum (in prob space) to ~1
    assert bool(jnp.allclose(jnp.sum(jnp.exp(out), axis=-1), 1.0, atol=1e-4))
    # check against the pure-JAX f32 reference (loose tol: bf16 MXU operands)
    ref = gnn_reference(x0, edge_index, params)
    assert bool(jnp.max(jnp.abs(out - ref)) < 0.2), "mismatch vs JAX reference"

    print("KERNEL_OK")
</pallas_src>

<mosaic_0001>
module attributes {stable_mosaic.version = 11 : i64} {
  func.func @_feat_kernel(%arg0: i32, %arg1: memref<128x16xbf16, #tpu.memory_space<vmem>>, %arg2: memref<16x32xbf16, #tpu.memory_space<vmem>>, %arg3: memref<128x32xbf16, #tpu.memory_space<vmem>>) attributes {dimension_semantics = [#tpu.dimension_semantics<parallel>], iteration_bounds = array<i64: 2>, scalar_prefetch = 0 : i64, scratch_operands = 0 : i64, tpu.core_type = #tpu.core_type<tc>, window_params = [{transform_indices = @transform_0, window_bounds = array<i64: 128, 16>}, {pipeline_mode = #tpu.pipeline_mode<synchronous>, transform_indices = @transform_1, window_bounds = array<i64: 16, 32>}, {transform_indices = @transform_2, window_bounds = array<i64: 128, 32>}]} {
    %c0 = arith.constant 0 : index
    %c0_0 = arith.constant 0 : index
    %0 = vector.load %arg1[%c0, %c0_0] : memref<128x16xbf16, #tpu.memory_space<vmem>>, vector<128x16xbf16>
    %c0_1 = arith.constant 0 : index
    %c0_2 = arith.constant 0 : index
    %1 = vector.load %arg2[%c0_1, %c0_2] : memref<16x32xbf16, #tpu.memory_space<vmem>>, vector<16x32xbf16>
    %cst = arith.constant dense<0.000000e+00> : vector<128x32xf32>
    %2 = tpu.matmul %0, %1, %cst {dimension_numbers = #tpu.dot_dimension_numbers<[1], [0], [0], [1], [0, 0, 1, 1], [], []>} : vector<128x16xbf16>, vector<16x32xbf16>, vector<128x32xf32> -> vector<128x32xf32>
    %3 = arith.truncf %2 : vector<128x32xf32> to vector<128x32xbf16>
    %c0_3 = arith.constant 0 : index
    %c0_4 = arith.constant 0 : index
    %4 = vector.load %arg3[%c0_3, %c0_4] : memref<128x32xbf16, #tpu.memory_space<vmem>>, vector<128x32xbf16>
    tpu.vector_store %arg3[%c0_3, %c0_4], %3 {strides = array<i32>} : memref<128x32xbf16, #tpu.memory_space<vmem>>, vector<128x32xbf16>,
    return
  }
  func.func @transform_0(%arg0: i32) -> (i32, i32) {
    %c0_i32 = arith.constant 0 : i32
    %c0_i32_0 = arith.constant 0 : i32
    return %arg0, %c0_i32 : i32, i32
  }
  func.func @transform_1(%arg0: i32) -> (i32, i32) {
    %c0_i32 = arith.constant 0 : i32
    %c0_i32_0 = arith.constant 0 : i32
    %c0_i32_1 = arith.constant 0 : i32
    return %c0_i32, %c0_i32_0 : i32, i32
  }
  func.func @transform_2(%arg0: i32) -> (i32, i32) {
    %c0_i32 = arith.constant 0 : i32
    %c0_i32_0 = arith.constant 0 : i32
    return %arg0, %c0_i32 : i32, i32
  }
}

</mosaic_0001>

<llo_original>
// kernel: tpu_custom_call.1
$region0: #{tpu_custom_call.1}
  #allocation0 [shape = 'u32[]', space=smem, size = 0x4, offset = 0x4, fixed_abs, tag = 'smem constant byte address 0x4 - core index']
  #allocation1 [shape = 'u32[144,128]{1,0:T(1,128)}', space=vmem, size = 0x12000, scoped, tag = 'internal scratch']
  %s0 = inlined_call_operand.vmem [shape: bf16[256,16], index: 0, kind: input, shape index: {}]
  %s1 = inlined_call_operand.vmem [shape: bf16[16,32], index: 1, kind: input, shape index: {}]
  %s2 = inlined_call_operand.vmem [shape: bf16[256,32], index: 2, kind: output, shape index: {}]
  %s3 = sld [smem:[#allocation0]]
  $region41: #{tpu_custom_call.1} parent=0
    _
  %s5 = ssub.s32 1, %s3
  %s6 = scalar_select 0, %s5, %s3
  loop: start=0, step=1, limit=4
  $region2: #{tpu_custom_call.1} parent=0 // loop_pre_header
    _
  $region3: #{tpu_custom_call.1} parent=0 // loop_header
    %s8 = sphi 0, %s12
    %p9 = scmp.ge.s32.totalorder %s8, 4
    %s18 = sphi 0, %s20
    %s21 = sphi 0, %s18
    %s22 = sphi 0, %s21
    %s38 = sphi 0, %s22
    %s42 = sphi 0, %s42
    %s44 = sphi 0, %s42
    %s45 = sphi 0, %s44
    %s59 = sphi 0, %s45
    %s65 = sphi 0, %s67
    %s68 = sphi 0, %s65
    %s69 = sphi 0, %s68
    %s85 = sphi 0, %s69
  $region4: #{tpu_custom_call.1} parent=0 // loop_header_branch
    %11 = sbr.rel (%p9) target = $region8
  $region5: #{tpu_custom_call.1} parent=0 // loop_body
    %s13 = ssub.s32 %s8, 1
    %s14 = ssub.s32 %s8, 2
    %s15 = sadd.s32 %s8, 1
    %s16 = ssub.s32 %s8, %s15
    %p17 = scmp.eq.s32.totalorder %s16, 0
    %s19 = sadd.s32 %s18, 1
    %s20 = scalar_select %p17, %s18, %s19
    %p23 = pneg %p17
    %p24 = scmp.eq.s32.totalorder %s8, 1
    %p25 = por %p23, %p24
    %p26 = scmp.ne.s32.totalorder %s18, %s21
    %p27 = scmp.eq.s32.totalorder %s8, 0
    %p28 = por %p26, %p27
    %p29 = scmp.ne.s32.totalorder %s18, %s21
    %p30 = scmp.eq.s32.totalorder %s13, 1
    %p31 = por %p29, %p30
    %p32 = scmp.ne.s32.totalorder %s21, %s22
    %p33 = scmp.eq.s32.totalorder %s13, 0
    %p34 = por %p32, %p33
    %p35 = scmp.ne.s32.totalorder %s21, %s22
    %p36 = scmp.eq.s32.totalorder %s14, 1
    %p37 = por %p35, %p36
    %p39 = scmp.ne.s32.totalorder %s22, %s38
    %p40 = scmp.eq.s32.totalorder %s14, 0
    %p41 = por %p39, %p40
    %s43 = sadd.s32 %s42, 1
    %p46 = scmp.eq.s32.totalorder %s8, 1
    %p47 = scmp.ne.s32.totalorder %s42, %s44
    %p48 = scmp.eq.s32.totalorder %s8, 0
    %p49 = por %p47, %p48
    %p50 = scmp.ne.s32.totalorder %s42, %s44
    %p51 = scmp.eq.s32.totalorder %s13, 1
    %p52 = por %p50, %p51
    %p53 = scmp.ne.s32.totalorder %s44, %s45
    %p54 = scmp.eq.s32.totalorder %s13, 0
    %p55 = por %p53, %p54
    %p56 = scmp.ne.s32.totalorder %s44, %s45
    %p57 = scmp.eq.s32.totalorder %s14, 1
    %p58 = por %p56, %p57
    %p60 = scmp.ne.s32.totalorder %s45, %s59
    %p61 = scmp.eq.s32.totalorder %s14, 0
    %p62 = por %p60, %p61
    %s63 = ssub.s32 %s8, %s15
    %p64 = scmp.eq.s32.totalorder %s63, 0
    %s66 = sadd.s32 %s65, 1
    %s67 = scalar_select %p64, %s65, %s66
    %p70 = pneg %p64
    %p71 = scmp.eq.s32.totalorder %s8, 1
    %p72 = por %p70, %p71
    %p73 = scmp.ne.s32.totalorder %s65, %s68
    %p74 = scmp.eq.s32.totalorder %s8, 0
    %p75 = por %p73, %p74
    %p76 = scmp.ne.s32.totalorder %s65, %s68
    %p77 = scmp.eq.s32.totalorder %s13, 1
    %p78 = por %p76, %p77
    %p79 = scmp.ne.s32.totalorder %s68, %s69
    %p80 = scmp.eq.s32.totalorder %s13, 0
    %p81 = por %p79, %p80
    %p82 = scmp.ne.s32.totalorder %s68, %s69
    %p83 = scmp.eq.s32.totalorder %s14, 1
    %p84 = por %p82, %p83
    %p86 = scmp.ne.s32.totalorder %s69, %s85
    %p87 = scmp.eq.s32.totalorder %s14, 0
    %p88 = por %p86, %p87
    %p89 = scmp.le.s32.totalorder 1, %s8
    %p90 = scmp.lt.s32.totalorder %s8, 3
    %p91 = pnand %p89, %p90
    %p92 = pneg %p91
    // Predicated region
    $region9: #{tpu_custom_call.1} parent=5 // pred_check
      _
    $region10: #{tpu_custom_call.1} parent=5 // pred_check_branch
      %94 = sbr.rel (%p91) target = $region12
    $region11: #{tpu_custom_call.1} parent=5 // pred_region
      %s95 = ssub.s32 %s8, 1
      // Predicated region
      $region13: #{tpu_custom_call.1} parent=11 // pred_check
        %p96 = pneg %p55
      $region14: #{tpu_custom_call.1} parent=11 // pred_check_branch
        %98 = sbr.rel (%p96) target = $region16
      $region15: #{tpu_custom_call.1} parent=11 // pred_region
        _
      $region16: #{tpu_custom_call.1} parent=11 // pred_fallthru
        _
    $region12: #{tpu_custom_call.1} parent=5 // pred_fallthru
      _
    %p99 = scmp.lt.s32.totalorder %s8, 2
    // Predicated region
    $region17: #{tpu_custom_call.1} parent=5 // pred_check
      %p100 = pneg %p99
    $region18: #{tpu_custom_call.1} parent=5 // pred_check_branch
      %102 = sbr.rel (%p100) target = $region20
    $region19: #{tpu_custom_call.1} parent=5 // pred_region
      // Predicated region
      $region21: #{tpu_custom_call.1} parent=19 // pred_check
        %p103 = pneg %p28
      $region22: #{tpu_custom_call.1} parent=19 // pred_check_branch
        %105 = sbr.rel (%p103) target = $region24
      $region23: #{tpu_custom_call.1} parent=19 // pred_region
        %s106 = smul.u32 16, %s8
        %p107 = scmp.lt.s32.totalorder %s106, 31
        %s108 = scalar_select %p107, %s106, 31
        %s109 = smul.addr %s108, 4
        %s110 = scalar_lea.vmem %s0, %s109
        %s111 = smul.u32 16, %s8
      $region24: #{tpu_custom_call.1} parent=19 // pred_fallthru
        _
    $region20: #{tpu_custom_call.1} parent=5 // pred_fallthru
      _
    %p112 = scmp.le.s32.totalorder 1, %s8
    %p113 = scmp.lt.s32.totalorder %s8, 3
    %p114 = pnand %p112, %p113
    %p115 = pneg %p114
    // Predicated region
    $region25: #{tpu_custom_call.1} parent=5 // pred_check
      _
    $region26: #{tpu_custom_call.1} parent=5 // pred_check_branch
      %117 = sbr.rel (%p114) target = $region28
    $region27: #{tpu_custom_call.1} parent=5 // pred_region
      %s118 = ssub.s32 %s8, 1
      %s119 = smul.u32 16, %s13
      %p120 = scmp.lt.s32.totalorder %s119, 31
      %s121 = scalar_select %p120, %s119, 31
      %s122 = smul.addr %s121, 4
      %s123 = scalar_lea.vmem %s0, %s122
      %p124 = pneg %p34
      %p125 = pneg %p31
      %p126 = pneg %p55
      %p127 = pneg %p52
      %p128 = pneg %p81
      %p129 = pneg %p78
      %s130 = smul.u32 16, %s13
      %p131 = scmp.lt.s32.totalorder %s130, 31
      %s132 = scalar_select %p131, %s130, 31
      %s133 = smul.addr %s132, 4
      %s134 = scalar_lea.vmem %s2, %s133
      %s135 = smul.u32 16, %s13
      %p136 = scmp.lt.s32.totalorder %s135, 31
      %s137 = scalar_select %p136, %s135, 31
      %s138 = smul.addr %s137, 4
      %s139 = scalar_lea.vmem %s0, %s138
      %s140 = smul.u32 16, %s13
      %s141 = smul.u32 16, %s13
      %p142 = scmp.lt.s32.totalorder %s141, 31
      %s143 = scalar_select %p142, %s141, 31
      %s144 = smul.addr %s143, 4
      %s145 = scalar_lea.vmem %s2, %s144
      %s146 = smul.u32 16, %s13
      %v148 = vld [vmem:[%s139] sm:$0xf]
      %v149 = vld [vmem:[%s139 + $0x4] sm:$0xf]
      %v150 = vld [vmem:[%s139 + $0x8] sm:$0xf]
      %v151 = vld [vmem:[%s139 + $0xc] sm:$0xf]
      %v152 = vld [vmem:[%s139 + $0x10] sm:$0xf]
      %v153 = vld [vmem:[%s139 + $0x14] sm:$0xf]
      %v154 = vld [vmem:[%s139 + $0x18] sm:$0xf]
      %v155 = vld [vmem:[%s139 + $0x1c] sm:$0xf]
      %v156 = vld [vmem:[%s139 + $0x20] sm:$0xf]
      %v157 = vld [vmem:[%s139 + $0x24] sm:$0xf]
      %v158 = vld [vmem:[%s139 + $0x28] sm:$0xf]
      %v159 = vld [vmem:[%s139 + $0x2c] sm:$0xf]
      %v160 = vld [vmem:[%s139 + $0x30] sm:$0xf]
      %v161 = vld [vmem:[%s139 + $0x34] sm:$0xf]
      %v162 = vld [vmem:[%s139 + $0x38] sm:$0xf]
      %v163 = vld [vmem:[%s139 + $0x3c] sm:$0xf]
      %v164 = vld [vmem:[%s1] sm:$0xf]
      %v165 = vld [vmem:[%s1 + $0x4] sm:$0xf]
      %v182 = vunpack.c.l.b16 %v148
      %v183 = vunpack.c.l.b16 %v149
      %v184 = vunpack.c.l.b16 %v150
      %v185 = vunpack.c.l.b16 %v151
      %v186 = vunpack.c.l.b16 %v152
      %v187 = vunpack.c.l.b16 %v153
      %v188 = vunpack.c.l.b16 %v154
      %v189 = vunpack.c.l.b16 %v155
      %v190 = vunpack.c.l.b16 %v156
      %v191 = vunpack.c.l.b16 %v157
      %v192 = vunpack.c.l.b16 %v158
      %v193 = vunpack.c.l.b16 %v159
      %v194 = vunpack.c.l.b16 %v160
      %v195 = vunpack.c.l.b16 %v161
      %v196 = vunpack.c.l.b16 %v162
      %v197 = vunpack.c.l.b16 %v163
      %v198 = vpack.c.b16 %v183, %v182
      %v199 = vpack.c.b16 %v185, %v184
      %v200 = vpack.c.b16 %v187, %v186
      %v201 = vpack.c.b16 %v189, %v188
      %v202 = vpack.c.b16 %v191, %v190
      %v203 = vpack.c.b16 %v193, %v192
      %v204 = vpack.c.b16 %v195, %v194
      %v205 = vpack.c.b16 %v197, %v196
      %v208 = vunpack.c.l.b16 %v164
      %v209 = vunpack.c.l.b16 %v165
      %v210 = vpack.c.b16 %v209, %v208
      %vm212 = vcmask 130048
      %v214 = vsel %vm212, %v198, 0
      %v217 = vsel %vm212, %v199, 0
      %v220 = vsel %vm212, %v200, 0
      %v223 = vsel %vm212, %v201, 0
      %v226 = vsel %vm212, %v202, 0
      %v229 = vsel %vm212, %v203, 0
      %v232 = vsel %vm212, %v204, 0
      %v235 = vsel %vm212, %v205, 0
      %237 = vmatprep.subr.bf16.mxu0 0
      %238 = vmatpush1.bf16.msra.mxu0 0
      %239 = vmatprep.subr.bf16.mxu0 0
      %240 = vmatpush1.bf16.msra.mxu0 0
      %241 = vmatprep.subr.bf16.mxu0 0
      %242 = vmatpush1.bf16.msra.mxu0 0
      %243 = vmatprep.subr.bf16.mxu0 0
      %244 = vmatpush1.bf16.msra.mxu0 0
      %245 = vmatprep.subr.bf16.mxu0 0
      %246 = vmatpush1.bf16.msra.mxu0 0
      %247 = vmatprep.subr.bf16.mxu0 0
      %248 = vmatpush1.bf16.msra.mxu0 0
      %249 = vmatprep.subr.bf16.mxu0 0
      %250 = vmatpush1.bf16.msra.mxu0 0
      %251 = vmatprep.subr.bf16.mxu0 0
      %252 = vmatpush1.bf16.msra.mxu0 %v210
      %253 = vmatprep.subr.bf16.mxu0 0
      %254 = vmatpush2.bf16.msra.mxu0 0
      %255 = vmatprep.subr.bf16.mxu0 0
      %256 = vmatpush2.bf16.msra.mxu0 0
      %257 = vmatprep.subr.bf16.mxu0 0
      %258 = vmatpush2.bf16.msra.mxu0 0
      %259 = vmatprep.subr.bf16.mxu0 0
      %260 = vmatpush2.bf16.msra.mxu0 0
      %261 = vmatprep.subr.bf16.mxu0 0
      %262 = vmatpush2.bf16.msra.mxu0 0
      %263 = vmatprep.subr.bf16.mxu0 0
      %264 = vmatpush2.bf16.msra.mxu0 0
      %265 = vmatprep.subr.bf16.mxu0 0
      %266 = vmatpush2.bf16.msra.mxu0 0
      %267 = vmatprep.subr.bf16.mxu0 0
      %268 = vmatpush2.bf16.msra.mxu0 0
      %269 = vmatprep.mubr.bf16.mxu0 0
      %270 = vmatmul.mubr.bf16.gmra.mxu0 %v214
      %v271 = vpop.f32.mrf.mxu0
      %v272 = vadd.f32 0.0, %v271
      %v273 = vpop.f32.mrf.mxu0
      %v274 = vpop.f32.mrf.mxu0
      %v275 = vadd.f32 0.0, %v274
      %v276 = vpop.f32.mrf.mxu0
      %277 = vmatprep.mubr.bf16.mxu0 0
      %278 = vmatmul.mubr.bf16.gmra.mxu0 %v217
      %v279 = vpop.f32.mrf.mxu0
      %v280 = vadd.f32 0.0, %v279
      %v281 = vpop.f32.mrf.mxu0
      %v282 = vpop.f32.mrf.mxu0
      %v283 = vadd.f32 0.0, %v282
      %v284 = vpop.f32.mrf.mxu0
      %285 = vmatprep.mubr.bf16.mxu0 0
      %286 = vmatmul.mubr.bf16.gmra.mxu0 %v220
      %v287 = vpop.f32.mrf.mxu0
      %v288 = vadd.f32 0.0, %v287
      %v289 = vpop.f32.mrf.mxu0
      %v290 = vpop.f32.mrf.mxu0
      %v291 = vadd.f32 0.0, %v290
      %v292 = vpop.f32.mrf.mxu0
      %293 = vmatprep.mubr.bf16.mxu0 0
      %294 = vmatmul.mubr.bf16.gmra.mxu0 %v223
      %v295 = vpop.f32.mrf.mxu0
      %v296 = vadd.f32 0.0, %v295
      %v297 = vpop.f32.mrf.mxu0
      %v298 = vpop.f32.mrf.mxu0
      %v299 = vadd.f32 0.0, %v298
      %v300 = vpop.f32.mrf.mxu0
      %301 = vmatprep.mubr.bf16.mxu0 0
      %302 = vmatmul.mubr.bf16.gmra.mxu0 %v226
      %v303 = vpop.f32.mrf.mxu0
      %v304 = vadd.f32 0.0, %v303
      %v305 = vpop.f32.mrf.mxu0
      %v306 = vpop.f32.mrf.mxu0
      %v307 = vadd.f32 0.0, %v306
      %v308 = vpop.f32.mrf.mxu0
      %309 = vmatprep.mubr.bf16.mxu0 0
      %310 = vmatmul.mubr.bf16.gmra.mxu0 %v229
      %v311 = vpop.f32.mrf.mxu0
      %v312 = vadd.f32 0.0, %v311
      %v313 = vpop.f32.mrf.mxu0
      %v314 = vpop.f32.mrf.mxu0
      %v315 = vadd.f32 0.0, %v314
      %v316 = vpop.f32.mrf.mxu0
      %317 = vmatprep.mubr.bf16.mxu0 0
      %318 = vmatmul.mubr.bf16.gmra.mxu0 %v232
      %v319 = vpop.f32.mrf.mxu0
      %v320 = vadd.f32 0.0, %v319
      %v321 = vpop.f32.mrf.mxu0
      %v322 = vpop.f32.mrf.mxu0
      %v323 = vadd.f32 0.0, %v322
      %v324 = vpop.f32.mrf.mxu0
      %325 = vmatprep.mubr.bf16.mxu0 0
      %326 = vmatmul.mubr.bf16.gmra.mxu0 %v235
      %v327 = vpop.f32.mrf.mxu0
      %v328 = vadd.f32 0.0, %v327
      %v329 = vpop.f32.mrf.mxu0
      %v330 = vpop.f32.mrf.mxu0
      %v331 = vadd.f32 0.0, %v330
      %v332 = vpop.f32.mrf.mxu0
      %333 = vdwg.mxu0
      %v334 = vpack.c.bf16 %v275, %v272
      %v335 = vpack.c.bf16 %v283, %v280
      %v336 = vpack.c.bf16 %v291, %v288
      %v337 = vpack.c.bf16 %v299, %v296
      %v338 = vpack.c.bf16 %v307, %v304
      %v339 = vpack.c.bf16 %v315, %v312
      %v340 = vpack.c.bf16 %v323, %v320
      %v341 = vpack.c.bf16 %v331, %v328
      %v350 = vunpack.c.l.b16 %v334
      %v351 = vunpack.c.h.b16 %v334
      %v352 = vunpack.c.l.b16 %v335
      %v353 = vunpack.c.h.b16 %v335
      %v354 = vunpack.c.l.b16 %v336
      %v355 = vunpack.c.h.b16 %v336
      %v356 = vunpack.c.l.b16 %v337
      %v357 = vunpack.c.h.b16 %v337
      %v358 = vunpack.c.l.b16 %v338
      %v359 = vunpack.c.h.b16 %v338
      %v360 = vunpack.c.l.b16 %v339
      %v361 = vunpack.c.h.b16 %v339
      %v362 = vunpack.c.l.b16 %v340
      %v363 = vunpack.c.h.b16 %v340
      %v364 = vunpack.c.l.b16 %v341
      %v365 = vunpack.c.h.b16 %v341
      %v366 = vpack.c.b16 %v350, %v350
      %v367 = vpack.c.b16 %v351, %v351
      %v368 = vpack.c.b16 %v352, %v352
      %v369 = vpack.c.b16 %v353, %v353
      %v370 = vpack.c.b16 %v354, %v354
      %v371 = vpack.c.b16 %v355, %v355
      %v372 = vpack.c.b16 %v356, %v356
      %v373 = vpack.c.b16 %v357, %v357
      %v374 = vpack.c.b16 %v358, %v358
      %v375 = vpack.c.b16 %v359, %v359
      %v376 = vpack.c.b16 %v360, %v360
      %v377 = vpack.c.b16 %v361, %v361
      %v378 = vpack.c.b16 %v362, %v362
      %v379 = vpack.c.b16 %v363, %v363
      %v380 = vpack.c.b16 %v364, %v364
      %v381 = vpack.c.b16 %v365, %v365
      %vm398 = vcmask 257024
      %399 = vst.msk [vmem:[%s145] sm:$0xf] %vm398, %v366
      %400 = vst.msk [vmem:[%s145 + $0x4] sm:$0xf] %vm398, %v367
      %401 = vst.msk [vmem:[%s145 + $0x8] sm:$0xf] %vm398, %v368
      %402 = vst.msk [vmem:[%s145 + $0xc] sm:$0xf] %vm398, %v369
      %403 = vst.msk [vmem:[%s145 + $0x10] sm:$0xf] %vm398, %v370
      %404 = vst.msk [vmem:[%s145 + $0x14] sm:$0xf] %vm398, %v371
      %405 = vst.msk [vmem:[%s145 + $0x18] sm:$0xf] %vm398, %v372
      %406 = vst.msk [vmem:[%s145 + $0x1c] sm:$0xf] %vm398, %v373
      %407 = vst.msk [vmem:[%s145 + $0x20] sm:$0xf] %vm398, %v374
      %408 = vst.msk [vmem:[%s145 + $0x24] sm:$0xf] %vm398, %v375
      %409 = vst.msk [vmem:[%s145 + $0x28] sm:$0xf] %vm398, %v376
      %410 = vst.msk [vmem:[%s145 + $0x2c] sm:$0xf] %vm398, %v377
      %411 = vst.msk [vmem:[%s145 + $0x30] sm:$0xf] %vm398, %v378
      %412 = vst.msk [vmem:[%s145 + $0x34] sm:$0xf] %vm398, %v379
      %413 = vst.msk [vmem:[%s145 + $0x38] sm:$0xf] %vm398, %v380
      %414 = vst.msk [vmem:[%s145 + $0x3c] sm:$0xf] %vm398, %v381
      %s415 = smul.u32 16, %s13
      %p416 = scmp.lt.s32.totalorder %s415, 31
      %s417 = scalar_select %p416, %s415, 31
      %s418 = smul.addr %s417, 4
      %s419 = scalar_lea.vmem %s2, %s418
      // Predicated region
      $region29: #{tpu_custom_call.1} parent=27 // pred_check
        %p420 = pneg %p78
      $region30: #{tpu_custom_call.1} parent=27 // pred_check_branch
        %422 = sbr.rel (%p420) target = $region32
      $region31: #{tpu_custom_call.1} parent=27 // pred_region
        %s423 = smul.u32 16, %s13
      $region32: #{tpu_custom_call.1} parent=27 // pred_fallthru
        _
    $region28: #{tpu_custom_call.1} parent=5 // pred_fallthru
      _
    %p424 = scmp.le.s32.totalorder 2, %s8
    // Predicated region
    $region33: #{tpu_custom_call.1} parent=5 // pred_check
      %p425 = pneg %p424
    $region34: #{tpu_custom_call.1} parent=5 // pred_check_branch
      %427 = sbr.rel (%p425) target = $region36
    $region35: #{tpu_custom_call.1} parent=5 // pred_region
      %s428 = ssub.s32 %s8, 2
      // Predicated region
      $region37: #{tpu_custom_call.1} parent=35 // pred_check
        %p429 = pneg %p84
      $region38: #{tpu_custom_call.1} parent=35 // pred_check_branch
        %431 = sbr.rel (%p429) target = $region40
      $region39: #{tpu_custom_call.1} parent=35 // pred_region
        %s432 = smul.u32 16, %s14
        %p433 = scmp.lt.s32.totalorder %s432, 31
        %s434 = scalar_select %p433, %s432, 31
        %s435 = smul.addr %s434, 4
        %s436 = scalar_lea.vmem %s2, %s435
      $region40: #{tpu_custom_call.1} parent=35 // pred_fallthru
        _
    $region36: #{tpu_custom_call.1} parent=5 // pred_fallthru
      _
  $region6: #{tpu_custom_call.1} parent=0 // loop_footer
    %s12 = sadd.s32 1, %s8
  $region7: #{tpu_custom_call.1} parent=0 // loop_footer_branch
    %7 = sbr.rel target = $region3
  $region8: #{tpu_custom_call.1} parent=0 // loop_exit
    _

</llo_original>
